<compile_context>
chip_gen: v7x
topology: tpu7x:2x2x1
jax: 0.10.0
libtpu: 0.0.40
codegen_flags: <defaults>
</compile_context>

<pallas_src>
import jax
import jax.numpy as jnp
from jax.experimental import pallas as pl
from jax.experimental.pallas import tpu as pltpu


# --------------------------------------------------------------------------
# Kernels
# --------------------------------------------------------------------------
def _mlp_mean(x, w1_ref, b1_ref, w2_ref, b2_ref, w3_ref, b3_ref):
    """3-layer MLP (Linear-ReLU-Linear-ReLU-Linear) + tanh => mean."""
    h1 = jnp.dot(x, w1_ref[...], preferred_element_type=jnp.float32) + b1_ref[...]
    h1 = jnp.maximum(h1, 0.0)
    h2 = jnp.dot(h1, w2_ref[...], preferred_element_type=jnp.float32) + b2_ref[...]
    h2 = jnp.maximum(h2, 0.0)
    m = jnp.dot(h2, w3_ref[...], preferred_element_type=jnp.float32) + b3_ref[...]
    return jnp.tanh(m)


def _policy_mean_kernel(x_ref, w1_ref, b1_ref, w2_ref, b2_ref, w3_ref, b3_ref,
                        mean_ref):
    """Deterministic path: mean only (no noise input, no action work)."""
    mean_ref[...] = _mlp_mean(x_ref[...], w1_ref, b1_ref, w2_ref, b2_ref,
                              w3_ref, b3_ref)


def _policy_sample_kernel(x_ref, w1_ref, b1_ref, w2_ref, b2_ref, w3_ref, b3_ref,
                          logstd_ref, noise_ref, act_ref):
    """Stochastic path: clamp(randn * exp(log_std) + mean, -1, 1)."""
    mean = _mlp_mean(x_ref[...], w1_ref, b1_ref, w2_ref, b2_ref, w3_ref, b3_ref)
    std = jnp.exp(logstd_ref[...])          # EUP slot -> effectively free
    act_ref[...] = jnp.clip(noise_ref[...] * std + mean, -1.0, 1.0)


# --------------------------------------------------------------------------
# Wrapper
# --------------------------------------------------------------------------
def _round_up(x, m):
    return (x + m - 1) // m * m


def _pick_batch_tile(batch):
    """Batch tile: single tile for small batches, 1024-row tiles for large."""
    if batch <= 1024:
        return _round_up(batch, 8)          # sublane-aligned single tile
    return 1024                              # fits VMEM easily, even on v7x (64 MiB)


def low_level_policy_forward(params, input_data, noise=None, deterministic=False):
    """JAX/Pallas equivalent of LowLevelPolicy.forward.

    params: dict with w1,b1,w2,b2,w3,b3,log_std (biases / log_std as (1, dim) rows).
    input_data: (B, state_dim + 3) float32.
    noise: (B, action_dim) standard-normal samples (required if not deterministic).
    """
    B, in_dim = input_data.shape
    action_dim = params["w3"].shape[1]

    TB = _pick_batch_tile(B)
    B_pad = _round_up(B, TB)
    x = input_data
    if B_pad != B:
        x = jnp.pad(x, ((0, B_pad - B), (0, 0)))
    grid = (B_pad // TB,)

    # Per-tile rows (double-buffered by the pipeline).
    def row_spec(feat):
        return pl.BlockSpec((TB, feat), lambda i: (i, 0))

    # Constant block => DMA'd once, resident in VMEM across all grid steps.
    def const_spec(arr):
        return pl.BlockSpec(arr.shape, lambda i: (0, 0))

    weight_args = (params["w1"], params["b1"], params["w2"], params["b2"],
                   params["w3"], params["b3"])
    weight_specs = [const_spec(a) for a in weight_args]

    compiler_params = pltpu.CompilerParams(dimension_semantics=("parallel",))

    if deterministic:
        mean = pl.pallas_call(
            _policy_mean_kernel,
            out_shape=jax.ShapeDtypeStruct((B_pad, action_dim), jnp.float32),
            grid_spec=pltpu.PrefetchScalarGridSpec(
                num_scalar_prefetch=0,
                grid=grid,
                in_specs=[row_spec(in_dim)] + weight_specs,
                out_specs=row_spec(action_dim),
            ),
            compiler_params=compiler_params,
        )(x, *weight_args)
        return mean[:B]

    if noise is None:
        raise ValueError("noise (B, action_dim) is required for the stochastic path")
    n = noise
    if B_pad != B:
        n = jnp.pad(n, ((0, B_pad - B), (0, 0)))

    action = pl.pallas_call(
        _policy_sample_kernel,
        out_shape=jax.ShapeDtypeStruct((B_pad, action_dim), jnp.float32),
        grid_spec=pltpu.PrefetchScalarGridSpec(
            num_scalar_prefetch=0,
            grid=grid,
            in_specs=[row_spec(in_dim)] + weight_specs
                     + [const_spec(params["log_std"]), row_spec(action_dim)],
            out_specs=row_spec(action_dim),
        ),
        compiler_params=compiler_params,
    )(x, *weight_args, params["log_std"], n)
    return action[:B]


# --------------------------------------------------------------------------
# Params / reference
# --------------------------------------------------------------------------
def init_params(key, state_dim, hidden_dim, action_dim):
    input_dim = state_dim + 3
    ks = jax.random.split(key, 6)

    def linear(kw, kb, fan_in, fan_out):
        bound = 1.0 / jnp.sqrt(fan_in)  # PyTorch-style uniform init bound
        w = jax.random.uniform(kw, (fan_in, fan_out), jnp.float32, -bound, bound)
        b = jax.random.uniform(kb, (1, fan_out), jnp.float32, -bound, bound)
        return w, b

    w1, b1 = linear(ks[0], ks[1], input_dim, hidden_dim)
    w2, b2 = linear(ks[2], ks[3], hidden_dim, hidden_dim)
    w3, b3 = linear(ks[4], ks[5], hidden_dim, action_dim)
    return {
        "w1": w1, "b1": b1,
        "w2": w2, "b2": b2,
        "w3": w3, "b3": b3,
        "log_std": jnp.zeros((1, action_dim), jnp.float32),
    }


def _reference_forward(params, x, noise, deterministic=False):
    h1 = jnp.maximum(x @ params["w1"] + params["b1"], 0.0)
    h2 = jnp.maximum(h1 @ params["w2"] + params["b2"], 0.0)
    mean = jnp.tanh(h2 @ params["w3"] + params["b3"])
    if deterministic:
        return mean
    std = jnp.exp(params["log_std"])
    return jnp.clip(noise * std + mean, -1.0, 1.0)


# TODO(synk): evaluate_actions / value_net are not part of forward() and are not
# implemented here (forward-pass only, per the spec).

if __name__ == "__main__":
    state_dim, hidden_dim, action_dim = 13, 32, 4
    input_dim = state_dim + 3  # 16

    key = jax.random.PRNGKey(0)
    k_param, k_x, k_noise, k_x2, k_noise2 = jax.random.split(key, 5)
    params = init_params(k_param, state_dim, hidden_dim, action_dim)

    # --- small batch (tile == batch, single grid step) ---
    batch = 8
    x = jax.random.normal(k_x, (batch, input_dim), jnp.float32)
    noise = jax.random.normal(k_noise, (batch, action_dim), jnp.float32)

    action = jax.block_until_ready(
        low_level_policy_forward(params, x, noise=noise, deterministic=False))
    mean = jax.block_until_ready(
        low_level_policy_forward(params, x, noise=noise, deterministic=True))

    assert jnp.allclose(action, _reference_forward(params, x, noise, False),
                        atol=1e-5), "action mismatch"
    assert jnp.allclose(mean, _reference_forward(params, x, noise, True),
                        atol=1e-5), "mean mismatch"

    # --- non-multiple batch (exercises padding + slice-back path) ---
    batch2 = 37
    x2 = jax.random.normal(k_x2, (batch2, input_dim), jnp.float32)
    noise2 = jax.random.normal(k_noise2, (batch2, action_dim), jnp.float32)

    action2 = jax.block_until_ready(
        low_level_policy_forward(params, x2, noise=noise2, deterministic=False))
    mean2 = jax.block_until_ready(
        low_level_policy_forward(params, x2, noise=noise2, deterministic=True))

    assert action2.shape == (batch2, action_dim)
    assert jnp.allclose(action2, _reference_forward(params, x2, noise2, False),
                        atol=1e-5), "padded action mismatch"
    assert jnp.allclose(mean2, _reference_forward(params, x2, noise2, True),
                        atol=1e-5), "padded mean mismatch"

    print("KERNEL_OK")
</pallas_src>

<mosaic_0001>
module attributes {stable_mosaic.version = 11 : i64} {
  func.func @_policy_sample_kernel(%arg0: i32, %arg1: memref<8x16xf32, #tpu.memory_space<vmem>>, %arg2: memref<16x32xf32, #tpu.memory_space<vmem>>, %arg3: memref<1x32xf32, #tpu.memory_space<vmem>>, %arg4: memref<32x32xf32, #tpu.memory_space<vmem>>, %arg5: memref<1x32xf32, #tpu.memory_space<vmem>>, %arg6: memref<32x4xf32, #tpu.memory_space<vmem>>, %arg7: memref<1x4xf32, #tpu.memory_space<vmem>>, %arg8: memref<1x4xf32, #tpu.memory_space<vmem>>, %arg9: memref<8x4xf32, #tpu.memory_space<vmem>>, %arg10: memref<8x4xf32, #tpu.memory_space<vmem>>) attributes {dimension_semantics = [#tpu.dimension_semantics<parallel>], iteration_bounds = array<i64: 1>, scalar_prefetch = 0 : i64, scratch_operands = 0 : i64, tpu.core_type = #tpu.core_type<tc>, window_params = [{transform_indices = @transform_0, window_bounds = array<i64: 8, 16>}, {pipeline_mode = #tpu.pipeline_mode<synchronous>, transform_indices = @transform_1, window_bounds = array<i64: 16, 32>}, {pipeline_mode = #tpu.pipeline_mode<synchronous>, transform_indices = @transform_2, window_bounds = array<i64: 1, 32>}, {pipeline_mode = #tpu.pipeline_mode<synchronous>, transform_indices = @transform_3, window_bounds = array<i64: 32, 32>}, {pipeline_mode = #tpu.pipeline_mode<synchronous>, transform_indices = @transform_4, window_bounds = array<i64: 1, 32>}, {pipeline_mode = #tpu.pipeline_mode<synchronous>, transform_indices = @transform_5, window_bounds = array<i64: 32, 4>}, {pipeline_mode = #tpu.pipeline_mode<synchronous>, transform_indices = @transform_6, window_bounds = array<i64: 1, 4>}, {pipeline_mode = #tpu.pipeline_mode<synchronous>, transform_indices = @transform_7, window_bounds = array<i64: 1, 4>}, {transform_indices = @transform_8, window_bounds = array<i64: 8, 4>}, {transform_indices = @transform_9, window_bounds = array<i64: 8, 4>}]} {
    %c0 = arith.constant 0 : index
    %c0_0 = arith.constant 0 : index
    %0 = vector.load %arg1[%c0, %c0_0] : memref<8x16xf32, #tpu.memory_space<vmem>>, vector<8x16xf32>
    %c0_1 = arith.constant 0 : index
    %c0_2 = arith.constant 0 : index
    %1 = vector.load %arg2[%c0_1, %c0_2] : memref<16x32xf32, #tpu.memory_space<vmem>>, vector<16x32xf32>
    %cst = arith.constant dense<0.000000e+00> : vector<8x32xf32>
    %2 = tpu.matmul %0, %1, %cst {dimension_numbers = #tpu.dot_dimension_numbers<[1], [0], [0], [1], [0, 0, 1, 1], [], []>} : vector<8x16xf32>, vector<16x32xf32>, vector<8x32xf32> -> vector<8x32xf32>
    %c0_3 = arith.constant 0 : index
    %c0_4 = arith.constant 0 : index
    %3 = vector.load %arg3[%c0_3, %c0_4] : memref<1x32xf32, #tpu.memory_space<vmem>>, vector<1x32xf32>
    %4 = vector.broadcast %3 : vector<1x32xf32> to vector<8x32xf32>
    %5 = arith.addf %2, %4 : vector<8x32xf32>
    %cst_5 = arith.constant 0.000000e+00 : f32
    %6 = vector.broadcast %cst_5 : f32 to vector<8x32xf32>
    %7 = arith.maximumf %5, %6 : vector<8x32xf32>
    %c0_6 = arith.constant 0 : index
    %c0_7 = arith.constant 0 : index
    %8 = vector.load %arg4[%c0_6, %c0_7] : memref<32x32xf32, #tpu.memory_space<vmem>>, vector<32x32xf32>
    %cst_8 = arith.constant dense<0.000000e+00> : vector<8x32xf32>
    %9 = tpu.matmul %7, %8, %cst_8 {dimension_numbers = #tpu.dot_dimension_numbers<[1], [0], [0], [1], [0, 0, 1, 1], [], []>} : vector<8x32xf32>, vector<32x32xf32>, vector<8x32xf32> -> vector<8x32xf32>
    %c0_9 = arith.constant 0 : index
    %c0_10 = arith.constant 0 : index
    %10 = vector.load %arg5[%c0_9, %c0_10] : memref<1x32xf32, #tpu.memory_space<vmem>>, vector<1x32xf32>
    %11 = vector.broadcast %10 : vector<1x32xf32> to vector<8x32xf32>
    %12 = arith.addf %9, %11 : vector<8x32xf32>
    %cst_11 = arith.constant 0.000000e+00 : f32
    %13 = vector.broadcast %cst_11 : f32 to vector<8x32xf32>
    %14 = arith.maximumf %12, %13 : vector<8x32xf32>
    %c0_12 = arith.constant 0 : index
    %c0_13 = arith.constant 0 : index
    %15 = vector.load %arg6[%c0_12, %c0_13] : memref<32x4xf32, #tpu.memory_space<vmem>>, vector<32x4xf32>
    %cst_14 = arith.constant dense<0.000000e+00> : vector<8x4xf32>
    %16 = tpu.matmul %14, %15, %cst_14 {dimension_numbers = #tpu.dot_dimension_numbers<[1], [0], [0], [1], [0, 0, 1, 1], [], []>} : vector<8x32xf32>, vector<32x4xf32>, vector<8x4xf32> -> vector<8x4xf32>
    %c0_15 = arith.constant 0 : index
    %c0_16 = arith.constant 0 : index
    %17 = vector.load %arg7[%c0_15, %c0_16] : memref<1x4xf32, #tpu.memory_space<vmem>>, vector<1x4xf32>
    %18 = vector.broadcast %17 : vector<1x4xf32> to vector<8x4xf32>
    %19 = arith.addf %16, %18 : vector<8x4xf32>
    %20 = math.tanh %19 : vector<8x4xf32>
    %c0_17 = arith.constant 0 : index
    %c0_18 = arith.constant 0 : index
    %21 = vector.load %arg8[%c0_17, %c0_18] : memref<1x4xf32, #tpu.memory_space<vmem>>, vector<1x4xf32>
    %22 = math.exp %21 : vector<1x4xf32>
    %c0_19 = arith.constant 0 : index
    %c0_20 = arith.constant 0 : index
    %23 = vector.load %arg9[%c0_19, %c0_20] : memref<8x4xf32, #tpu.memory_space<vmem>>, vector<8x4xf32>
    %24 = vector.broadcast %22 : vector<1x4xf32> to vector<8x4xf32>
    %25 = arith.mulf %23, %24 : vector<8x4xf32>
    %26 = arith.addf %25, %20 : vector<8x4xf32>
    %cst_21 = arith.constant -1.000000e+00 : f32
    %cst_22 = arith.constant 1.000000e+00 : f32
    %27 = vector.broadcast %cst_21 : f32 to vector<8x4xf32>
    %28 = arith.maximumf %27, %26 : vector<8x4xf32>
    %29 = vector.broadcast %cst_22 : f32 to vector<8x4xf32>
    %30 = arith.minimumf %29, %28 : vector<8x4xf32>
    %c0_23 = arith.constant 0 : index
    %c0_24 = arith.constant 0 : index
    %31 = vector.load %arg10[%c0_23, %c0_24] : memref<8x4xf32, #tpu.memory_space<vmem>>, vector<8x4xf32>
    tpu.vector_store %arg10[%c0_23, %c0_24], %30 {strides = array<i32>} : memref<8x4xf32, #tpu.memory_space<vmem>>, vector<8x4xf32>,
    return
  }
  func.func @transform_0(%arg0: i32) -> (i32, i32) {
    %c0_i32 = arith.constant 0 : i32
    %c0_i32_0 = arith.constant 0 : i32
    return %arg0, %c0_i32 : i32, i32
  }
  func.func @transform_1(%arg0: i32) -> (i32, i32) {
    %c0_i32 = arith.constant 0 : i32
    %c0_i32_0 = arith.constant 0 : i32
    %c0_i32_1 = arith.constant 0 : i32
    return %c0_i32, %c0_i32_0 : i32, i32
  }
  func.func @transform_2(%arg0: i32) -> (i32, i32) {
    %c0_i32 = arith.constant 0 : i32
    %c0_i32_0 = arith.constant 0 : i32
    %c0_i32_1 = arith.constant 0 : i32
    return %c0_i32, %c0_i32_0 : i32, i32
  }
  func.func @transform_3(%arg0: i32) -> (i32, i32) {
    %c0_i32 = arith.constant 0 : i32
    %c0_i32_0 = arith.constant 0 : i32
    %c0_i32_1 = arith.constant 0 : i32
    return %c0_i32, %c0_i32_0 : i32, i32
  }
  func.func @transform_4(%arg0: i32) -> (i32, i32) {
    %c0_i32 = arith.constant 0 : i32
    %c0_i32_0 = arith.constant 0 : i32
    %c0_i32_1 = arith.constant 0 : i32
    return %c0_i32, %c0_i32_0 : i32, i32
  }
  func.func @transform_5(%arg0: i32) -> (i32, i32) {
    %c0_i32 = arith.constant 0 : i32
    %c0_i32_0 = arith.constant 0 : i32
    %c0_i32_1 = arith.constant 0 : i32
    return %c0_i32, %c0_i32_0 : i32, i32
  }
  func.func @transform_6(%arg0: i32) -> (i32, i32) {
    %c0_i32 = arith.constant 0 : i32
    %c0_i32_0 = arith.constant 0 : i32
    %c0_i32_1 = arith.constant 0 : i32
    return %c0_i32, %c0_i32_0 : i32, i32
  }
  func.func @transform_7(%arg0: i32) -> (i32, i32) {
    %c0_i32 = arith.constant 0 : i32
    %c0_i32_0 = arith.constant 0 : i32
    %c0_i32_1 = arith.constant 0 : i32
    return %c0_i32, %c0_i32_0 : i32, i32
  }
  func.func @transform_8(%arg0: i32) -> (i32, i32) {
    %c0_i32 = arith.constant 0 : i32
    %c0_i32_0 = arith.constant 0 : i32
    return %arg0, %c0_i32 : i32, i32
  }
  func.func @transform_9(%arg0: i32) -> (i32, i32) {
    %c0_i32 = arith.constant 0 : i32
    %c0_i32_0 = arith.constant 0 : i32
    return %arg0, %c0_i32 : i32, i32
  }
}

</mosaic_0001>

<llo_original>
// kernel: tpu_custom_call.1
$region0: #{tpu_custom_call.1}
  #allocation0 [shape = 'u32[]', space=smem, size = 0x4, offset = 0x4, fixed_abs, tag = 'smem constant byte address 0x4 - core index']
  #allocation1 [shape = 'u32[144,128]{1,0:T(1,128)}', space=vmem, size = 0x12000, scoped, tag = 'internal scratch']
  %s0 = inlined_call_operand.vmem [shape: f32[8,16], index: 0, kind: input, shape index: {}]
  %s1 = inlined_call_operand.vmem [shape: f32[16,32], index: 1, kind: input, shape index: {}]
  %s2 = inlined_call_operand.vmem [shape: f32[1,32], index: 2, kind: input, shape index: {}]
  %s3 = inlined_call_operand.vmem [shape: f32[32,32], index: 3, kind: input, shape index: {}]
  %s4 = inlined_call_operand.vmem [shape: f32[1,32], index: 4, kind: input, shape index: {}]
  %s5 = inlined_call_operand.vmem [shape: f32[32,4], index: 5, kind: input, shape index: {}]
  %s6 = inlined_call_operand.vmem [shape: f32[1,4], index: 6, kind: input, shape index: {}]
  %s7 = inlined_call_operand.vmem [shape: f32[1,4], index: 7, kind: input, shape index: {}]
  %s8 = inlined_call_operand.vmem [shape: f32[8,4], index: 8, kind: input, shape index: {}]
  %s9 = inlined_call_operand.vmem [shape: f32[8,4], index: 9, kind: output, shape index: {}]
  %s10 = sld [smem:[#allocation0]]
  $region46: #{tpu_custom_call.1} parent=0
    _
  %s12 = ssub.s32 1, %s10
  %s13 = scalar_select 0, %s12, %s10
  // Predicated region
  $region2: #{tpu_custom_call.1} parent=0 // pred_check
    _
  $region3: #{tpu_custom_call.1} parent=0 // pred_check_branch
    %15 = sbr.rel (0) target = $region5
  $region4: #{tpu_custom_call.1} parent=0 // pred_region
    _
  $region5: #{tpu_custom_call.1} parent=0 // pred_fallthru
    _
  // Predicated region
  $region6: #{tpu_custom_call.1} parent=0 // pred_check
    _
  $region7: #{tpu_custom_call.1} parent=0 // pred_check_branch
    %17 = sbr.rel (0) target = $region9
  $region8: #{tpu_custom_call.1} parent=0 // pred_region
    _
  $region9: #{tpu_custom_call.1} parent=0 // pred_fallthru
    _
  // Predicated region
  $region10: #{tpu_custom_call.1} parent=0 // pred_check
    _
  $region11: #{tpu_custom_call.1} parent=0 // pred_check_branch
    %19 = sbr.rel (0) target = $region13
  $region12: #{tpu_custom_call.1} parent=0 // pred_region
    _
  $region13: #{tpu_custom_call.1} parent=0 // pred_fallthru
    _
  // Predicated region
  $region14: #{tpu_custom_call.1} parent=0 // pred_check
    _
  $region15: #{tpu_custom_call.1} parent=0 // pred_check_branch
    %21 = sbr.rel (0) target = $region17
  $region16: #{tpu_custom_call.1} parent=0 // pred_region
    _
  $region17: #{tpu_custom_call.1} parent=0 // pred_fallthru
    _
  // Predicated region
  $region18: #{tpu_custom_call.1} parent=0 // pred_check
    _
  $region19: #{tpu_custom_call.1} parent=0 // pred_check_branch
    %23 = sbr.rel (0) target = $region21
  $region20: #{tpu_custom_call.1} parent=0 // pred_region
    _
  $region21: #{tpu_custom_call.1} parent=0 // pred_fallthru
    _
  // Predicated region
  $region22: #{tpu_custom_call.1} parent=0 // pred_check
    _
  $region23: #{tpu_custom_call.1} parent=0 // pred_check_branch
    %25 = sbr.rel (0) target = $region25
  $region24: #{tpu_custom_call.1} parent=0 // pred_region
    _
  $region25: #{tpu_custom_call.1} parent=0 // pred_fallthru
    _
  // Predicated region
  $region26: #{tpu_custom_call.1} parent=0 // pred_check
    _
  $region27: #{tpu_custom_call.1} parent=0 // pred_check_branch
    %27 = sbr.rel (0) target = $region29
  $region28: #{tpu_custom_call.1} parent=0 // pred_region
    _
  $region29: #{tpu_custom_call.1} parent=0 // pred_fallthru
    _
  // Predicated region
  $region30: #{tpu_custom_call.1} parent=0 // pred_check
    _
  $region31: #{tpu_custom_call.1} parent=0 // pred_check_branch
    %29 = sbr.rel (0) target = $region33
  $region32: #{tpu_custom_call.1} parent=0 // pred_region
    _
  $region33: #{tpu_custom_call.1} parent=0 // pred_fallthru
    _
  // Predicated region
  $region34: #{tpu_custom_call.1} parent=0 // pred_check
    _
  $region35: #{tpu_custom_call.1} parent=0 // pred_check_branch
    %31 = sbr.rel (0) target = $region37
  $region36: #{tpu_custom_call.1} parent=0 // pred_region
    _
  $region37: #{tpu_custom_call.1} parent=0 // pred_fallthru
    _
  %v32 = vld [vmem:[%s0] sm:$0xff]
  %v33 = vld [vmem:[%s1] sm:$0xff]
  %v34 = vld [vmem:[%s1 + $0x8] sm:$0xff]
  %v35 = vld [vmem:[%s2] sm:$0x1]
  %v37 = vlaneseq
  %v38 = vshrl.u32 %v37, 7
  %v39 = vsub.s32 0, %v38
  %v40 = vrot.slane %v35, %v39
  %vm42 = vcmask 130048
  %v44 = vsel %vm42, %v32, 0
  %46 = vmatprep.subr.mxu0 0.0
  %47 = vmatpush1.msra.mxu0 %v33
  %48 = vmatprep.subr.mxu0 0.0
  %49 = vmatpush1.msra.mxu0 %v34
  %50 = vmatprep.subr.mxu0 0.0
  %51 = vmatpush1.msra.mxu0 0.0
  %52 = vmatprep.subr.mxu0 0.0
  %53 = vmatpush1.msra.mxu0 0.0
  %54 = vmatprep.subr.mxu0 0.0
  %55 = vmatpush1.msra.mxu0 0.0
  %56 = vmatprep.subr.mxu0 0.0
  %57 = vmatpush1.msra.mxu0 0.0
  %58 = vmatprep.subr.mxu0 0.0
  %59 = vmatpush1.msra.mxu0 0.0
  %60 = vmatprep.subr.mxu0 0.0
  %61 = vmatpush1.msra.mxu0 0.0
  %62 = vmatprep.subr.mxu0 0.0
  %63 = vmatpush1.msra.mxu0 0.0
  %64 = vmatprep.subr.mxu0 0.0
  %65 = vmatpush1.msra.mxu0 0.0
  %66 = vmatprep.subr.mxu0 0.0
  %67 = vmatpush1.msra.mxu0 0.0
  %68 = vmatprep.subr.mxu0 0.0
  %69 = vmatpush1.msra.mxu0 0.0
  %70 = vmatprep.subr.mxu0 0.0
  %71 = vmatpush1.msra.mxu0 0.0
  %72 = vmatprep.subr.mxu0 0.0
  %73 = vmatpush1.msra.mxu0 0.0
  %74 = vmatprep.subr.mxu0 0.0
  %75 = vmatpush1.msra.mxu0 0.0
  %76 = vmatprep.subr.mxu0 0.0
  %77 = vmatpush1.msra.mxu0 0.0
  %78 = vmatprep.subr.mxu0 0.0
  %79 = vmatpush1.msra.mxu0 0.0
  %80 = vmatprep.subr.mxu0 0.0
  %81 = vmatpush1.msra.mxu0 0.0
  %82 = vmatprep.subr.mxu0 0.0
  %83 = vmatpush1.msra.mxu0 0.0
  %84 = vmatprep.subr.mxu0 0.0
  %85 = vmatpush1.msra.mxu0 0.0
  %86 = vmatprep.subr.mxu0 0.0
  %87 = vmatpush1.msra.mxu0 0.0
  %88 = vmatprep.subr.mxu0 0.0
  %89 = vmatpush1.msra.mxu0 0.0
  %90 = vmatprep.subr.mxu0 0.0
  %91 = vmatpush1.msra.mxu0 0.0
  %92 = vmatprep.subr.mxu0 0.0
  %93 = vmatpush1.msra.mxu0 0.0
  %94 = vmatprep.subr.mxu0 0.0
  %95 = vmatpush1.msra.mxu0 0.0
  %96 = vmatprep.subr.mxu0 0.0
  %97 = vmatpush1.msra.mxu0 0.0
  %98 = vmatprep.subr.mxu0 0.0
  %99 = vmatpush1.msra.mxu0 0.0
  %100 = vmatprep.subr.mxu0 0.0
  %101 = vmatpush1.msra.mxu0 0.0
  %102 = vmatprep.subr.mxu0 0.0
  %103 = vmatpush1.msra.mxu0 0.0
  %104 = vmatprep.subr.mxu0 0.0
  %105 = vmatpush1.msra.mxu0 0.0
  %106 = vmatprep.subr.mxu0 0.0
  %107 = vmatpush1.msra.mxu0 0.0
  %108 = vmatprep.subr.mxu0 0.0
  %109 = vmatpush1.msra.mxu0 0.0
  %110 = vmatprep.mubr.f32.mxu0 0.0
  %111 = vmatmul.mubr.f32.gmra.mrb[0].mxu0 %v44
  %v112 = vpop.f32.mrb[0].mxu0
  %v113 = vadd.f32 %v40, %v112
  %v114 = vpop.f32.mrb[0].mxu0
  %115 = vdwg.mxu0
  %v116 = vmax.f32 %v113, 0.0
  %v117 = vld [vmem:[%s3] sm:$0xff]
  %v118 = vld [vmem:[%s3 + $0x8] sm:$0xff]
  %v119 = vld [vmem:[%s3 + $0x10] sm:$0xff]
  %v120 = vld [vmem:[%s3 + $0x18] sm:$0xff]
  %v121 = vld [vmem:[%s4] sm:$0x1]
  %v123 = vlaneseq
  %v124 = vshrl.u32 %v123, 7
  %v125 = vsub.s32 0, %v124
  %v126 = vrot.slane %v121, %v125
  %vm128 = vcmask 261120
  %v130 = vsel %vm128, %v116, 0
  %132 = vmatprep.subr.mxu0 0.0
  %133 = vmatpush1.msra.mxu0 %v117
  %134 = vmatprep.subr.mxu0 0.0
  %135 = vmatpush1.msra.mxu0 %v118
  %136 = vmatprep.subr.mxu0 0.0
  %137 = vmatpush1.msra.mxu0 %v119
  %138 = vmatprep.subr.mxu0 0.0
  %139 = vmatpush1.msra.mxu0 %v120
  %140 = vmatprep.subr.mxu0 0.0
  %141 = vmatpush1.msra.mxu0 0.0
  %142 = vmatprep.subr.mxu0 0.0
  %143 = vmatpush1.msra.mxu0 0.0
  %144 = vmatprep.subr.mxu0 0.0
  %145 = vmatpush1.msra.mxu0 0.0
  %146 = vmatprep.subr.mxu0 0.0
  %147 = vmatpush1.msra.mxu0 0.0
  %148 = vmatprep.subr.mxu0 0.0
  %149 = vmatpush1.msra.mxu0 0.0
  %150 = vmatprep.subr.mxu0 0.0
  %151 = vmatpush1.msra.mxu0 0.0
  %152 = vmatprep.subr.mxu0 0.0
  %153 = vmatpush1.msra.mxu0 0.0
  %154 = vmatprep.subr.mxu0 0.0
  %155 = vmatpush1.msra.mxu0 0.0
  %156 = vmatprep.subr.mxu0 0.0
  %157 = vmatpush1.msra.mxu0 0.0
  %158 = vmatprep.subr.mxu0 0.0
  %159 = vmatpush1.msra.mxu0 0.0
  %160 = vmatprep.subr.mxu0 0.0
  %161 = vmatpush1.msra.mxu0 0.0
  %162 = vmatprep.subr.mxu0 0.0
  %163 = vmatpush1.msra.mxu0 0.0
  %164 = vmatprep.subr.mxu0 0.0
  %165 = vmatpush1.msra.mxu0 0.0
  %166 = vmatprep.subr.mxu0 0.0
  %167 = vmatpush1.msra.mxu0 0.0
  %168 = vmatprep.subr.mxu0 0.0
  %169 = vmatpush1.msra.mxu0 0.0
  %170 = vmatprep.subr.mxu0 0.0
  %171 = vmatpush1.msra.mxu0 0.0
  %172 = vmatprep.subr.mxu0 0.0
  %173 = vmatpush1.msra.mxu0 0.0
  %174 = vmatprep.subr.mxu0 0.0
  %175 = vmatpush1.msra.mxu0 0.0
  %176 = vmatprep.subr.mxu0 0.0
  %177 = vmatpush1.msra.mxu0 0.0
  %178 = vmatprep.subr.mxu0 0.0
  %179 = vmatpush1.msra.mxu0 0.0
  %180 = vmatprep.subr.mxu0 0.0
  %181 = vmatpush1.msra.mxu0 0.0
  %182 = vmatprep.subr.mxu0 0.0
  %183 = vmatpush1.msra.mxu0 0.0
  %184 = vmatprep.subr.mxu0 0.0
  %185 = vmatpush1.msra.mxu0 0.0
  %186 = vmatprep.subr.mxu0 0.0
  %187 = vmatpush1.msra.mxu0 0.0
  %188 = vmatprep.subr.mxu0 0.0
  %189 = vmatpush1.msra.mxu0 0.0
  %190 = vmatprep.subr.mxu0 0.0
  %191 = vmatpush1.msra.mxu0 0.0
  %192 = vmatprep.subr.mxu0 0.0
  %193 = vmatpush1.msra.mxu0 0.0
  %194 = vmatprep.subr.mxu0 0.0
  %195 = vmatpush1.msra.mxu0 0.0
  %196 = vmatprep.mubr.f32.mxu0 0.0
  %197 = vmatmul.mubr.f32.gmra.mrb[0].mxu0 %v130
  %v198 = vpop.f32.mrb[0].mxu0
  %v199 = vadd.f32 %v126, %v198
  %v200 = vpop.f32.mrb[0].mxu0
  %201 = vdwg.mxu0
  %v202 = vmax.f32 %v199, 0.0
  %v203 = vld [vmem:[%s5] sm:$0xff]
  %v204 = vld [vmem:[%s5 + $0x8] sm:$0xff]
  %v205 = vld [vmem:[%s5 + $0x10] sm:$0xff]
  %v206 = vld [vmem:[%s5 + $0x18] sm:$0xff]
  %v207 = vld [vmem:[%s6] sm:$0x1]
  %v209 = vlaneseq
  %v210 = vshrl.u32 %v209, 7
  %v211 = vsub.s32 0, %v210
  %v212 = vrot.slane %v207, %v211
  %v215 = vsel %vm128, %v202, 0
  %217 = vmatprep.subr.mxu0 0.0
  %218 = vmatpush1.msra.mxu0 %v203
  %219 = vmatprep.subr.mxu0 0.0
  %220 = vmatpush1.msra.mxu0 %v204
  %221 = vmatprep.subr.mxu0 0.0
  %222 = vmatpush1.msra.mxu0 %v205
  %223 = vmatprep.subr.mxu0 0.0
  %224 = vmatpush1.msra.mxu0 %v206
  %225 = vmatprep.subr.mxu0 0.0
  %226 = vmatpush1.msra.mxu0 0.0
  %227 = vmatprep.subr.mxu0 0.0
  %228 = vmatpush1.msra.mxu0 0.0
  %229 = vmatprep.subr.mxu0 0.0
  %230 = vmatpush1.msra.mxu0 0.0
  %231 = vmatprep.subr.mxu0 0.0
  %232 = vmatpush1.msra.mxu0 0.0
  %233 = vmatprep.subr.mxu0 0.0
  %234 = vmatpush1.msra.mxu0 0.0
  %235 = vmatprep.subr.mxu0 0.0
  %236 = vmatpush1.msra.mxu0 0.0
  %237 = vmatprep.subr.mxu0 0.0
  %238 = vmatpush1.msra.mxu0 0.0
  %239 = vmatprep.subr.mxu0 0.0
  %240 = vmatpush1.msra.mxu0 0.0
  %241 = vmatprep.subr.mxu0 0.0
  %242 = vmatpush1.msra.mxu0 0.0
  %243 = vmatprep.subr.mxu0 0.0
  %244 = vmatpush1.msra.mxu0 0.0
  %245 = vmatprep.subr.mxu0 0.0
  %246 = vmatpush1.msra.mxu0 0.0
  %247 = vmatprep.subr.mxu0 0.0
  %248 = vmatpush1.msra.mxu0 0.0
  %249 = vmatprep.subr.mxu0 0.0
  %250 = vmatpush1.msra.mxu0 0.0
  %251 = vmatprep.subr.mxu0 0.0
  %252 = vmatpush1.msra.mxu0 0.0
  %253 = vmatprep.subr.mxu0 0.0
  %254 = vmatpush1.msra.mxu0 0.0
  %255 = vmatprep.subr.mxu0 0.0
  %256 = vmatpush1.msra.mxu0 0.0
  %257 = vmatprep.subr.mxu0 0.0
  %258 = vmatpush1.msra.mxu0 0.0
  %259 = vmatprep.subr.mxu0 0.0
  %260 = vmatpush1.msra.mxu0 0.0
  %261 = vmatprep.subr.mxu0 0.0
  %262 = vmatpush1.msra.mxu0 0.0
  %263 = vmatprep.subr.mxu0 0.0
  %264 = vmatpush1.msra.mxu0 0.0
  %265 = vmatprep.subr.mxu0 0.0
  %266 = vmatpush1.msra.mxu0 0.0
  %267 = vmatprep.subr.mxu0 0.0
  %268 = vmatpush1.msra.mxu0 0.0
  %269 = vmatprep.subr.mxu0 0.0
  %270 = vmatpush1.msra.mxu0 0.0
  %271 = vmatprep.subr.mxu0 0.0
  %272 = vmatpush1.msra.mxu0 0.0
  %273 = vmatprep.subr.mxu0 0.0
  %274 = vmatpush1.msra.mxu0 0.0
  %275 = vmatprep.subr.mxu0 0.0
  %276 = vmatpush1.msra.mxu0 0.0
  %277 = vmatprep.subr.mxu0 0.0
  %278 = vmatpush1.msra.mxu0 0.0
  %279 = vmatprep.subr.mxu0 0.0
  %280 = vmatpush1.msra.mxu0 0.0
  %281 = vmatprep.mubr.f32.mxu0 0.0
  %282 = vmatmul.mubr.f32.gmra.mrb[0].mxu0 %v215
  %v283 = vpop.f32.mrb[0].mxu0
  %v284 = vadd.f32 %v212, %v283
  %v285 = vpop.f32.mrb[0].mxu0
  %286 = vdwg.mxu0
  %v287 = vtanh.pop %v284
  %v288 = vld [vmem:[%s7] sm:$0x1]
  %v289 = vmul.f32 %v288, 1.442695
  %v290 = vpow.pop %v289
  %v291 = vld [vmem:[%s8] sm:$0xff]
  %v293 = vlaneseq
  %v294 = vshrl.u32 %v293, 7
  %v295 = vsub.s32 0, %v294
  %v296 = vrot.slane %v290, %v295
  %v298 = vmul.f32 %v291, %v296
  %v299 = vadd.f32 %v298, %v287
  %v300 = vmax.f32 %v299, -1.0
  %v301 = vmin.f32 %v300, 1.0
  %vm302 = vcmask 31744
  %303 = vst.msk [vmem:[%s9] sm:$0xff] %vm302, %v301
  // Predicated region
  $region38: #{tpu_custom_call.1} parent=0 // pred_check
    _
  $region39: #{tpu_custom_call.1} parent=0 // pred_check_branch
    %305 = sbr.rel (0) target = $region41
  $region40: #{tpu_custom_call.1} parent=0 // pred_region
    _
  $region41: #{tpu_custom_call.1} parent=0 // pred_fallthru
    _
  // Predicated region
  $region42: #{tpu_custom_call.1} parent=0 // pred_check
    _
  $region43: #{tpu_custom_call.1} parent=0 // pred_check_branch
    %307 = sbr.rel (0) target = $region45
  $region44: #{tpu_custom_call.1} parent=0 // pred_region
    _
  $region45: #{tpu_custom_call.1} parent=0 // pred_fallthru
    _

</llo_original>
